<compile_context>
chip_gen: v5e
topology: v5e:2x2
jax: 0.10.0
libtpu: 0.0.40
codegen_flags: <defaults>
</compile_context>

<pallas_src>
import functools

import jax
import jax.numpy as jnp
from jax.experimental import pallas as pl
from jax.experimental.pallas import tpu as pltpu


# ----------------------------- Pallas kernel -------------------------------


def _resblock_kernel(x_ref, w1_ref, cb1_ref, w2_ref, cb2b_ref, wb_ref, m_ref,
                     o_ref, *, W, d1, neg_slope):
    """One batch group.  Layout: channels on sublanes, Gb*H*W on lanes."""
    x = x_ref[0]                                           # (CP, L) f32
    masks = m_ref[...]                                     # (16, L) f32 {0,1}
    L = x.shape[1]

    def lrelu(v):
        return jnp.where(v > 0, v, neg_slope * v)

    def conv3x3(a, w_flat, cbias, d, mask_base):
        # Build the (9*CP, L) im2col matrix: taps on sublanes (8-aligned
        # slabs -> free tile placement), flattened spatial on lanes.  Zero
        # padding is realised with precomputed per-position masks; lane
        # shifts use the XLU rotate slot.  Wrap-around of the rotate only
        # ever lands on masked (out-of-image) positions, so packing several
        # batches on the lane axis stays correct.
        slabs = []
        mrow = 0
        for kh in range(3):
            for kw in range(3):
                if kh == 1 and kw == 1:                    # centre tap
                    slabs.append(a)
                    continue
                dh = (kh - 1) * d
                dw = (kw - 1) * d
                shift = dh * W + dw                        # flat source offset
                amt = (-shift) % L                         # static, >= 0
                shifted = pltpu.roll(a, amt, 1)            # out[j] = a[j+shift]
                m = masks[mask_base + mrow:mask_base + mrow + 1, :]   # (1, L)
                slabs.append(shifted * m)
                mrow += 1
        patches = jnp.concatenate(slabs, axis=0)           # (9*CP, L)
        # Single fused MXU matmul per conv.  f32 operands on purpose (tiny K);
        # cast both operands to bf16 here on v6e/v7x once K = 9*CP is large.
        out = jnp.dot(w_flat, patches, preferred_element_type=jnp.float32)
        return out + cbias                                 # coords + bias

    # Bypass: 1x1 CoordConv on x (its coord/bias map is folded into cb2b).
    res = jnp.dot(wb_ref[...], x, preferred_element_type=jnp.float32)

    a1 = lrelu(x)
    h1 = conv3x3(a1, w1_ref[...], cb1_ref[...], d1, 0)     # dilated 3x3
    a2 = lrelu(h1)
    h2 = conv3x3(a2, w2_ref[...], cb2b_ref[...], 1, 8)     # 3x3 pad 1 (+cbb)

    o_ref[0] = h2 + res


# ------------------------------ JAX wrapper ---------------------------------


def _round_up(v, m):
    return ((v + m - 1) // m) * m


def _num_batch_groups(B, HW, *, min_lanes_per_step=1024,
                      max_lanes_per_step=65536):
    # Grid steps == batch groups (tile boundaries must coincide with image
    # boundaries so the roll+mask im2col stays valid).  Prefer 2 steps so
    # v7x's two TensorCores both get work, but only if each step still has
    # enough lanes to amortize the ~0.35us/step overhead; otherwise run one
    # fully merged lane-dense step (strictly better on single-TC v5e/v6e).
    groups = 1
    if B % 2 == 0 and (B // 2) * HW >= min_lanes_per_step:
        groups = 2
    # VMEM guard for very large batches: split further while it divides evenly.
    while (B // groups) * HW > max_lanes_per_step and B % (groups * 2) == 0:
        groups *= 2
    return groups


def _coord_channels(H, W):
    # AddCoords semantics (square-input quirk preserved): xx varies along
    # width, normalised by (x_dim-1) == H-1; yy varies along height,
    # normalised by (y_dim-1) == W-1.
    ww = jnp.broadcast_to(jnp.arange(W, dtype=jnp.float32)[None, :], (H, W))
    hh = jnp.broadcast_to(jnp.arange(H, dtype=jnp.float32)[:, None], (H, W))
    xx = ww / (H - 1) * 2.0 - 1.0
    yy = hh / (W - 1) * 2.0 - 1.0
    return jnp.stack([xx, yy], axis=0)[None]               # (1, 2, H, W)


def _coord_bias_map(weight_oihw, bias, H, W, padding, dilation):
    """Per-position bias (Cout, H*W) = conv(coords, coord-weights) + bias."""
    cin_data = weight_oihw.shape[1] - 2
    w_coord = weight_oihw[:, cin_data:, :, :]              # (Cout, 2, KH, KW)
    cb = jax.lax.conv_general_dilated(
        _coord_channels(H, W), w_coord, window_strides=(1, 1),
        padding=[(padding, padding), (padding, padding)],
        rhs_dilation=(dilation, dilation),
        dimension_numbers=("NCHW", "OIHW", "NCHW"),
        precision=jax.lax.Precision.HIGHEST)[0]            # (Cout, H, W)
    cb = cb + bias[:, None, None]
    return cb.reshape(weight_oihw.shape[0], H * W).astype(jnp.float32)


def _flatten_data_weight_padded(weight_oihw, C, CP):
    """(Cout, C+2, 3, 3) -> (CP, 9*CP), tap-major column (kh*3+kw)*CP + ci,
    zero-padded on both channel axes, matching the in-kernel im2col order."""
    Cout = weight_oihw.shape[0]
    w = weight_oihw[:, :C, :, :]                           # data channels only
    w = jnp.transpose(w, (0, 2, 3, 1))                     # (Cout, KH, KW, C)
    w = jnp.pad(w, ((0, CP - Cout), (0, 0), (0, 0), (0, CP - C)))
    return w.reshape(CP, 9 * CP).astype(jnp.float32)


def _boundary_masks(H, W, dilations, Gb):
    """(8*len(dilations), Gb*H*W) f32 {0,1} validity masks, 8 non-center taps
    per dilation, kh-major / kw-minor order (matching the kernel loop)."""
    hh = jnp.arange(H)[:, None]
    ww = jnp.arange(W)[None, :]
    rows = []
    for d in dilations:
        for kh in range(3):
            for kw in range(3):
                if kh == 1 and kw == 1:
                    continue
                dh = (kh - 1) * d
                dw = (kw - 1) * d
                v = ((hh + dh >= 0) & (hh + dh < H) &
                     (ww + dw >= 0) & (ww + dw < W))
                rows.append(v.reshape(-1))
    m = jnp.stack(rows, axis=0).astype(jnp.float32)        # (16, H*W)
    return jnp.tile(m, (1, Gb))                            # (16, Gb*H*W)


def resblock_ada3(x_nchw, w1, b1, w2, b2, wb, bb, style=None, *,
                  dilation=2, negative_slope=0.01):
    """ResBlock_Ada3 forward.  Weights in PyTorch OIHW layout, Cin = C + 2."""
    del style  # the reference forward() never uses it
    B, C, H, W = x_nchw.shape
    assert H == W, "AddCoords (as written in the reference) requires H == W"
    assert w1.shape[0] == C and w2.shape[0] == C and wb.shape[0] == C
    HW = H * W
    CP = _round_up(C, 8)                                   # sublane-aligned
    G = _num_batch_groups(B, HW)
    Gb = B // G                                            # batches per step
    L = Gb * HW                                            # lanes per step

    # (B, C, H, W) -> zero-pad channels -> (G, CP, Gb*HW), lane-dense.
    x = jnp.pad(x_nchw.astype(jnp.float32), ((0, 0), (0, CP - C), (0, 0), (0, 0)))
    x_flat = x.reshape(G, Gb, CP, HW).transpose(0, 2, 1, 3).reshape(G, CP, L)

    w1f = _flatten_data_weight_padded(w1, C, CP)           # (CP, 9*CP)
    w2f = _flatten_data_weight_padded(w2, C, CP)
    wbf = jnp.pad(wb[:, :C, 0, 0].astype(jnp.float32),
                  ((0, CP - C), (0, CP - C)))              # (CP, CP)

    cb1 = _coord_bias_map(w1, b1, H, W, dilation, dilation)
    cb2b = (_coord_bias_map(w2, b2, H, W, 1, 1)
            + _coord_bias_map(wb, bb, H, W, 0, 1))         # conv2 + bypass fold
    cb1 = jnp.tile(jnp.pad(cb1, ((0, CP - C), (0, 0))), (1, Gb))     # (CP, L)
    cb2b = jnp.tile(jnp.pad(cb2b, ((0, CP - C), (0, 0))), (1, Gb))   # (CP, L)
    masks = _boundary_masks(H, W, (dilation, 1), Gb)       # (16, L)

    kernel = functools.partial(_resblock_kernel, W=W, d1=dilation,
                               neg_slope=negative_slope)

    flops = 2 * B * HW * CP * CP * (9 + 9 + 1)
    bytes_accessed = 4 * (x_flat.size + G * CP * L + w1f.size + w2f.size
                          + wbf.size + cb1.size + cb2b.size + masks.size)

    out = pl.pallas_call(
        kernel,
        out_shape=jax.ShapeDtypeStruct((G, CP, L), jnp.float32),
        grid=(G,),
        in_specs=[
            pl.BlockSpec((1, CP, L), lambda g: (g, 0, 0)),     # x slab
            pl.BlockSpec((CP, 9 * CP), lambda g: (0, 0)),      # conv1 data W
            pl.BlockSpec((CP, L), lambda g: (0, 0)),           # conv1 coord bias
            pl.BlockSpec((CP, 9 * CP), lambda g: (0, 0)),      # conv2 data W
            pl.BlockSpec((CP, L), lambda g: (0, 0)),           # conv2+bypass bias
            pl.BlockSpec((CP, CP), lambda g: (0, 0)),          # bypass data W
            pl.BlockSpec((16, L), lambda g: (0, 0)),           # boundary masks
        ],
        out_specs=pl.BlockSpec((1, CP, L), lambda g: (g, 0, 0)),
        compiler_params=pltpu.CompilerParams(
            dimension_semantics=("parallel",),
            vmem_limit_bytes=32 * 1024 * 1024,
        ),
        cost_estimate=pl.CostEstimate(
            flops=int(flops), transcendentals=0,
            bytes_accessed=int(bytes_accessed)),
    )(x_flat, w1f, cb1, w2f, cb2b, wbf, masks)

    # (G, CP, Gb*HW) -> (B, C, H, W); small wrapper-side transpose.
    out = out.reshape(G, CP, Gb, H, W).transpose(0, 2, 1, 3, 4)
    return out.reshape(B, CP, H, W)[:, :C]


# --------------------------- Pure-JAX reference -----------------------------


def _addcoords_ref(x):
    B, _, H, W = x.shape
    xx = jnp.broadcast_to(
        jnp.arange(W, dtype=x.dtype)[None, None, None, :], (B, 1, H, W))
    yy = jnp.broadcast_to(
        jnp.arange(H, dtype=x.dtype)[None, None, :, None], (B, 1, H, W))
    xx = xx / (H - 1) * 2.0 - 1.0        # PyTorch quirk: xx normalised by x_dim-1
    yy = yy / (W - 1) * 2.0 - 1.0        #                yy normalised by y_dim-1
    return jnp.concatenate([x, xx, yy], axis=1)


def _conv2d_ref(x, w, b, padding, dilation):
    out = jax.lax.conv_general_dilated(
        x, w, window_strides=(1, 1),
        padding=[(padding, padding), (padding, padding)],
        rhs_dilation=(dilation, dilation),
        dimension_numbers=("NCHW", "OIHW", "NCHW"),
        precision=jax.lax.Precision.HIGHEST)
    return out + b[None, :, None, None]


def resblock_ada3_ref(x, w1, b1, w2, b2, wb, bb, *, dilation=2,
                      negative_slope=0.01):
    lrelu = lambda v: jnp.where(v > 0, v, negative_slope * v)
    res = _conv2d_ref(_addcoords_ref(x), wb, bb, 0, 1)
    out = lrelu(x)
    out = _conv2d_ref(_addcoords_ref(out), w1, b1, dilation, dilation)
    out = lrelu(out)
    out = _conv2d_ref(_addcoords_ref(out), w2, b2, 1, 1)
    return out + res


# ----------------------------------- main -----------------------------------


def _conv_params(key, cout, cin, k):
    """Deterministic PyTorch-like Conv2d init: U(-b, b), b = 1/sqrt(fan_in)."""
    kw_key, kb_key = jax.random.split(key)
    bound = 1.0 / ((cin * k * k) ** 0.5)
    w = jax.random.uniform(kw_key, (cout, cin, k, k), jnp.float32, -bound, bound)
    b = jax.random.uniform(kb_key, (cout,), jnp.float32, -bound, bound)
    return w, b


if __name__ == "__main__":
    B, C, H, W = 2, 4, 16, 16
    DIL = 2

    key = jax.random.PRNGKey(0)
    kx, ks, k1, k2, kb = jax.random.split(key, 5)

    x = jax.random.normal(kx, (B, C, H, W), dtype=jnp.float32)
    style = jax.random.normal(ks, (B, 8), dtype=jnp.float32)   # unused by forward

    w1, b1 = _conv_params(k1, C, C + 2, 3)   # conv1: CoordConv 3x3, pad=dil=2
    w2, b2 = _conv_params(k2, C, C + 2, 3)   # conv2: CoordConv 3x3, pad=1
    wb, bb = _conv_params(kb, C, C + 2, 1)   # bypass: CoordConv 1x1

    out = resblock_ada3(x, w1, b1, w2, b2, wb, bb, style, dilation=DIL)
    jax.block_until_ready(out)

    ref = resblock_ada3_ref(x, w1, b1, w2, b2, wb, bb, dilation=DIL)
    assert out.shape == (B, C, H, W), out.shape
    max_err = float(jnp.max(jnp.abs(out - ref)))
    assert jnp.allclose(out, ref, atol=1e-3, rtol=1e-3), max_err

    print("KERNEL_OK")
</pallas_src>

<mosaic_0001>
module attributes {stable_mosaic.version = 11 : i64} {
  func.func @_resblock_kernel(%arg0: i32, %arg1: memref<1x8x512xf32, #tpu.memory_space<vmem>>, %arg2: memref<8x72xf32, #tpu.memory_space<vmem>>, %arg3: memref<8x512xf32, #tpu.memory_space<vmem>>, %arg4: memref<8x72xf32, #tpu.memory_space<vmem>>, %arg5: memref<8x512xf32, #tpu.memory_space<vmem>>, %arg6: memref<8x8xf32, #tpu.memory_space<vmem>>, %arg7: memref<16x512xf32, #tpu.memory_space<vmem>>, %arg8: memref<1x8x512xf32, #tpu.memory_space<vmem>>) attributes {dimension_semantics = [#tpu.dimension_semantics<parallel>], iteration_bounds = array<i64: 1>, scalar_prefetch = 0 : i64, scratch_operands = 0 : i64, tpu.core_type = #tpu.core_type<tc>, window_params = [{transform_indices = @transform_0, window_bounds = array<i64: 1, 8, 512>}, {pipeline_mode = #tpu.pipeline_mode<synchronous>, transform_indices = @transform_1, window_bounds = array<i64: 8, 72>}, {pipeline_mode = #tpu.pipeline_mode<synchronous>, transform_indices = @transform_2, window_bounds = array<i64: 8, 512>}, {pipeline_mode = #tpu.pipeline_mode<synchronous>, transform_indices = @transform_3, window_bounds = array<i64: 8, 72>}, {pipeline_mode = #tpu.pipeline_mode<synchronous>, transform_indices = @transform_4, window_bounds = array<i64: 8, 512>}, {pipeline_mode = #tpu.pipeline_mode<synchronous>, transform_indices = @transform_5, window_bounds = array<i64: 8, 8>}, {pipeline_mode = #tpu.pipeline_mode<synchronous>, transform_indices = @transform_6, window_bounds = array<i64: 16, 512>}, {transform_indices = @transform_7, window_bounds = array<i64: 1, 8, 512>}]} {
    %c0 = arith.constant 0 : index
    %c0_0 = arith.constant 0 : index
    %c0_1 = arith.constant 0 : index
    %0 = vector.load %arg1[%c0, %c0_0, %c0_1] : memref<1x8x512xf32, #tpu.memory_space<vmem>>, vector<1x8x512xf32>
    %1 = vector.shape_cast %0 : vector<1x8x512xf32> to vector<8x512xf32>
    %c0_2 = arith.constant 0 : index
    %c0_3 = arith.constant 0 : index
    %2 = vector.load %arg7[%c0_2, %c0_3] : memref<16x512xf32, #tpu.memory_space<vmem>>, vector<16x512xf32>
    %c0_4 = arith.constant 0 : index
    %c0_5 = arith.constant 0 : index
    %3 = vector.load %arg6[%c0_4, %c0_5] : memref<8x8xf32, #tpu.memory_space<vmem>>, vector<8x8xf32>
    %cst = arith.constant dense<0.000000e+00> : vector<8x512xf32>
    %4 = tpu.matmul %3, %1, %cst {dimension_numbers = #tpu.dot_dimension_numbers<[1], [0], [0], [1], [0, 0, 1, 1], [], []>} : vector<8x8xf32>, vector<8x512xf32>, vector<8x512xf32> -> vector<8x512xf32>
    %cst_6 = arith.constant 0.000000e+00 : f32
    %5 = vector.broadcast %cst_6 : f32 to vector<8x512xf32>
    %6 = arith.cmpf ogt, %1, %5 : vector<8x512xf32>
    %cst_7 = arith.constant 0.00999999977 : f32
    %7 = vector.broadcast %cst_7 : f32 to vector<8x512xf32>
    %8 = arith.mulf %7, %1 : vector<8x512xf32>
    %9 = arith.select %6, %1, %8 : vector<8x512xi1>, vector<8x512xf32>
    %c0_8 = arith.constant 0 : index
    %c0_9 = arith.constant 0 : index
    %10 = vector.load %arg2[%c0_8, %c0_9] : memref<8x72xf32, #tpu.memory_space<vmem>>, vector<8x72xf32>
    %c0_10 = arith.constant 0 : index
    %c0_11 = arith.constant 0 : index
    %11 = vector.load %arg3[%c0_10, %c0_11] : memref<8x512xf32, #tpu.memory_space<vmem>>, vector<8x512xf32>
    %c34_i32 = arith.constant 34 : i32
    %12 = tpu.dynamic_rotate %9 by %c34_i32 dim 1 : vector<8x512xf32>, i32 -> vector<8x512xf32>
    %13 = vector.extract_strided_slice %2 {offsets = [0, 0], sizes = [1, 512], strides = [1, 1]} : vector<16x512xf32> to vector<1x512xf32>
    %14 = vector.broadcast %13 : vector<1x512xf32> to vector<8x512xf32>
    %15 = arith.mulf %12, %14 : vector<8x512xf32>
    %c32_i32 = arith.constant 32 : i32
    %16 = tpu.dynamic_rotate %9 by %c32_i32 dim 1 : vector<8x512xf32>, i32 -> vector<8x512xf32>
    %17 = vector.extract_strided_slice %2 {offsets = [1, 0], sizes = [1, 512], strides = [1, 1]} : vector<16x512xf32> to vector<1x512xf32>
    %18 = vector.broadcast %17 : vector<1x512xf32> to vector<8x512xf32>
    %19 = arith.mulf %16, %18 : vector<8x512xf32>
    %c30_i32 = arith.constant 30 : i32
    %20 = tpu.dynamic_rotate %9 by %c30_i32 dim 1 : vector<8x512xf32>, i32 -> vector<8x512xf32>
    %21 = vector.extract_strided_slice %2 {offsets = [2, 0], sizes = [1, 512], strides = [1, 1]} : vector<16x512xf32> to vector<1x512xf32>
    %22 = vector.broadcast %21 : vector<1x512xf32> to vector<8x512xf32>
    %23 = arith.mulf %20, %22 : vector<8x512xf32>
    %c2_i32 = arith.constant 2 : i32
    %24 = tpu.dynamic_rotate %9 by %c2_i32 dim 1 : vector<8x512xf32>, i32 -> vector<8x512xf32>
    %25 = vector.extract_strided_slice %2 {offsets = [3, 0], sizes = [1, 512], strides = [1, 1]} : vector<16x512xf32> to vector<1x512xf32>
    %26 = vector.broadcast %25 : vector<1x512xf32> to vector<8x512xf32>
    %27 = arith.mulf %24, %26 : vector<8x512xf32>
    %c510_i32 = arith.constant 510 : i32
    %28 = tpu.dynamic_rotate %9 by %c510_i32 dim 1 : vector<8x512xf32>, i32 -> vector<8x512xf32>
    %29 = vector.extract_strided_slice %2 {offsets = [4, 0], sizes = [1, 512], strides = [1, 1]} : vector<16x512xf32> to vector<1x512xf32>
    %30 = vector.broadcast %29 : vector<1x512xf32> to vector<8x512xf32>
    %31 = arith.mulf %28, %30 : vector<8x512xf32>
    %c482_i32 = arith.constant 482 : i32
    %32 = tpu.dynamic_rotate %9 by %c482_i32 dim 1 : vector<8x512xf32>, i32 -> vector<8x512xf32>
    %33 = vector.extract_strided_slice %2 {offsets = [5, 0], sizes = [1, 512], strides = [1, 1]} : vector<16x512xf32> to vector<1x512xf32>
    %34 = vector.broadcast %33 : vector<1x512xf32> to vector<8x512xf32>
    %35 = arith.mulf %32, %34 : vector<8x512xf32>
    %c480_i32 = arith.constant 480 : i32
    %36 = tpu.dynamic_rotate %9 by %c480_i32 dim 1 : vector<8x512xf32>, i32 -> vector<8x512xf32>
    %37 = vector.extract_strided_slice %2 {offsets = [6, 0], sizes = [1, 512], strides = [1, 1]} : vector<16x512xf32> to vector<1x512xf32>
    %38 = vector.broadcast %37 : vector<1x512xf32> to vector<8x512xf32>
    %39 = arith.mulf %36, %38 : vector<8x512xf32>
    %c478_i32 = arith.constant 478 : i32
    %40 = tpu.dynamic_rotate %9 by %c478_i32 dim 1 : vector<8x512xf32>, i32 -> vector<8x512xf32>
    %41 = vector.extract_strided_slice %2 {offsets = [7, 0], sizes = [1, 512], strides = [1, 1]} : vector<16x512xf32> to vector<1x512xf32>
    %42 = vector.broadcast %41 : vector<1x512xf32> to vector<8x512xf32>
    %43 = arith.mulf %40, %42 : vector<8x512xf32>
    %44 = tpu.concatenate %15, %19, %23, %27, %9, %31, %35, %39, %43 in 0 : vector<8x512xf32>, vector<8x512xf32>, vector<8x512xf32>, vector<8x512xf32>, vector<8x512xf32>, vector<8x512xf32>, vector<8x512xf32>, vector<8x512xf32>, vector<8x512xf32> -> vector<72x512xf32>
    %cst_12 = arith.constant dense<0.000000e+00> : vector<8x512xf32>
    %45 = tpu.matmul %10, %44, %cst_12 {dimension_numbers = #tpu.dot_dimension_numbers<[1], [0], [0], [1], [0, 0, 1, 1], [], []>} : vector<8x72xf32>, vector<72x512xf32>, vector<8x512xf32> -> vector<8x512xf32>
    %46 = arith.addf %45, %11 : vector<8x512xf32>
    %cst_13 = arith.constant 0.000000e+00 : f32
    %47 = vector.broadcast %cst_13 : f32 to vector<8x512xf32>
    %48 = arith.cmpf ogt, %46, %47 : vector<8x512xf32>
    %cst_14 = arith.constant 0.00999999977 : f32
    %49 = vector.broadcast %cst_14 : f32 to vector<8x512xf32>
    %50 = arith.mulf %49, %46 : vector<8x512xf32>
    %51 = arith.select %48, %46, %50 : vector<8x512xi1>, vector<8x512xf32>
    %c0_15 = arith.constant 0 : index
    %c0_16 = arith.constant 0 : index
    %52 = vector.load %arg4[%c0_15, %c0_16] : memref<8x72xf32, #tpu.memory_space<vmem>>, vector<8x72xf32>
    %c0_17 = arith.constant 0 : index
    %c0_18 = arith.constant 0 : index
    %53 = vector.load %arg5[%c0_17, %c0_18] : memref<8x512xf32, #tpu.memory_space<vmem>>, vector<8x512xf32>
    %c17_i32 = arith.constant 17 : i32
    %54 = tpu.dynamic_rotate %51 by %c17_i32 dim 1 : vector<8x512xf32>, i32 -> vector<8x512xf32>
    %55 = vector.extract_strided_slice %2 {offsets = [8, 0], sizes = [1, 512], strides = [1, 1]} : vector<16x512xf32> to vector<1x512xf32>
    %56 = vector.broadcast %55 : vector<1x512xf32> to vector<8x512xf32>
    %57 = arith.mulf %54, %56 : vector<8x512xf32>
    %c16_i32 = arith.constant 16 : i32
    %58 = tpu.dynamic_rotate %51 by %c16_i32 dim 1 : vector<8x512xf32>, i32 -> vector<8x512xf32>
    %59 = vector.extract_strided_slice %2 {offsets = [9, 0], sizes = [1, 512], strides = [1, 1]} : vector<16x512xf32> to vector<1x512xf32>
    %60 = vector.broadcast %59 : vector<1x512xf32> to vector<8x512xf32>
    %61 = arith.mulf %58, %60 : vector<8x512xf32>
    %c15_i32 = arith.constant 15 : i32
    %62 = tpu.dynamic_rotate %51 by %c15_i32 dim 1 : vector<8x512xf32>, i32 -> vector<8x512xf32>
    %63 = vector.extract_strided_slice %2 {offsets = [10, 0], sizes = [1, 512], strides = [1, 1]} : vector<16x512xf32> to vector<1x512xf32>
    %64 = vector.broadcast %63 : vector<1x512xf32> to vector<8x512xf32>
    %65 = arith.mulf %62, %64 : vector<8x512xf32>
    %c1_i32 = arith.constant 1 : i32
    %66 = tpu.dynamic_rotate %51 by %c1_i32 dim 1 : vector<8x512xf32>, i32 -> vector<8x512xf32>
    %67 = vector.extract_strided_slice %2 {offsets = [11, 0], sizes = [1, 512], strides = [1, 1]} : vector<16x512xf32> to vector<1x512xf32>
    %68 = vector.broadcast %67 : vector<1x512xf32> to vector<8x512xf32>
    %69 = arith.mulf %66, %68 : vector<8x512xf32>
    %c511_i32 = arith.constant 511 : i32
    %70 = tpu.dynamic_rotate %51 by %c511_i32 dim 1 : vector<8x512xf32>, i32 -> vector<8x512xf32>
    %71 = vector.extract_strided_slice %2 {offsets = [12, 0], sizes = [1, 512], strides = [1, 1]} : vector<16x512xf32> to vector<1x512xf32>
    %72 = vector.broadcast %71 : vector<1x512xf32> to vector<8x512xf32>
    %73 = arith.mulf %70, %72 : vector<8x512xf32>
    %c497_i32 = arith.constant 497 : i32
    %74 = tpu.dynamic_rotate %51 by %c497_i32 dim 1 : vector<8x512xf32>, i32 -> vector<8x512xf32>
    %75 = vector.extract_strided_slice %2 {offsets = [13, 0], sizes = [1, 512], strides = [1, 1]} : vector<16x512xf32> to vector<1x512xf32>
    %76 = vector.broadcast %75 : vector<1x512xf32> to vector<8x512xf32>
    %77 = arith.mulf %74, %76 : vector<8x512xf32>
    %c496_i32 = arith.constant 496 : i32
    %78 = tpu.dynamic_rotate %51 by %c496_i32 dim 1 : vector<8x512xf32>, i32 -> vector<8x512xf32>
    %79 = vector.extract_strided_slice %2 {offsets = [14, 0], sizes = [1, 512], strides = [1, 1]} : vector<16x512xf32> to vector<1x512xf32>
    %80 = vector.broadcast %79 : vector<1x512xf32> to vector<8x512xf32>
    %81 = arith.mulf %78, %80 : vector<8x512xf32>
    %c495_i32 = arith.constant 495 : i32
    %82 = tpu.dynamic_rotate %51 by %c495_i32 dim 1 : vector<8x512xf32>, i32 -> vector<8x512xf32>
    %83 = vector.extract_strided_slice %2 {offsets = [15, 0], sizes = [1, 512], strides = [1, 1]} : vector<16x512xf32> to vector<1x512xf32>
    %84 = vector.broadcast %83 : vector<1x512xf32> to vector<8x512xf32>
    %85 = arith.mulf %82, %84 : vector<8x512xf32>
    %86 = tpu.concatenate %57, %61, %65, %69, %51, %73, %77, %81, %85 in 0 : vector<8x512xf32>, vector<8x512xf32>, vector<8x512xf32>, vector<8x512xf32>, vector<8x512xf32>, vector<8x512xf32>, vector<8x512xf32>, vector<8x512xf32>, vector<8x512xf32> -> vector<72x512xf32>
    %cst_19 = arith.constant dense<0.000000e+00> : vector<8x512xf32>
    %87 = tpu.matmul %52, %86, %cst_19 {dimension_numbers = #tpu.dot_dimension_numbers<[1], [0], [0], [1], [0, 0, 1, 1], [], []>} : vector<8x72xf32>, vector<72x512xf32>, vector<8x512xf32> -> vector<8x512xf32>
    %88 = arith.addf %87, %53 : vector<8x512xf32>
    %89 = arith.addf %88, %4 : vector<8x512xf32>
    %c0_20 = arith.constant 0 : index
    %c0_21 = arith.constant 0 : index
    %c0_22 = arith.constant 0 : index
    %90 = vector.load %arg8[%c0_20, %c0_21, %c0_22] : memref<1x8x512xf32, #tpu.memory_space<vmem>>, vector<1x8x512xf32>
    %91 = vector.shape_cast %90 : vector<1x8x512xf32> to vector<8x512xf32>
    %92 = vector.shape_cast %89 : vector<8x512xf32> to vector<1x8x512xf32>
    tpu.vector_store %arg8[%c0_20, %c0_21, %c0_22], %92 {strides = array<i32>} : memref<1x8x512xf32, #tpu.memory_space<vmem>>, vector<1x8x512xf32>,
    return
  }
  func.func @transform_0(%arg0: i32) -> (i32, i32, i32) {
    %c0_i32 = arith.constant 0 : i32
    %c0_i32_0 = arith.constant 0 : i32
    %c0_i32_1 = arith.constant 0 : i32
    return %arg0, %c0_i32, %c0_i32_0 : i32, i32, i32
  }
  func.func @transform_1(%arg0: i32) -> (i32, i32) {
    %c0_i32 = arith.constant 0 : i32
    %c0_i32_0 = arith.constant 0 : i32
    %c0_i32_1 = arith.constant 0 : i32
    return %c0_i32, %c0_i32_0 : i32, i32
  }
  func.func @transform_2(%arg0: i32) -> (i32, i32) {
    %c0_i32 = arith.constant 0 : i32
    %c0_i32_0 = arith.constant 0 : i32
    %c0_i32_1 = arith.constant 0 : i32
    return %c0_i32, %c0_i32_0 : i32, i32
  }
  func.func @transform_3(%arg0: i32) -> (i32, i32) {
    %c0_i32 = arith.constant 0 : i32
    %c0_i32_0 = arith.constant 0 : i32
    %c0_i32_1 = arith.constant 0 : i32
    return %c0_i32, %c0_i32_0 : i32, i32
  }
  func.func @transform_4(%arg0: i32) -> (i32, i32) {
    %c0_i32 = arith.constant 0 : i32
    %c0_i32_0 = arith.constant 0 : i32
    %c0_i32_1 = arith.constant 0 : i32
    return %c0_i32, %c0_i32_0 : i32, i32
  }
  func.func @transform_5(%arg0: i32) -> (i32, i32) {
    %c0_i32 = arith.constant 0 : i32
    %c0_i32_0 = arith.constant 0 : i32
    %c0_i32_1 = arith.constant 0 : i32
    return %c0_i32, %c0_i32_0 : i32, i32
  }
  func.func @transform_6(%arg0: i32) -> (i32, i32) {
    %c0_i32 = arith.constant 0 : i32
    %c0_i32_0 = arith.constant 0 : i32
    %c0_i32_1 = arith.constant 0 : i32
    return %c0_i32, %c0_i32_0 : i32, i32
  }
  func.func @transform_7(%arg0: i32) -> (i32, i32, i32) {
    %c0_i32 = arith.constant 0 : i32
    %c0_i32_0 = arith.constant 0 : i32
    %c0_i32_1 = arith.constant 0 : i32
    return %arg0, %c0_i32, %c0_i32_0 : i32, i32, i32
  }
}

</mosaic_0001>

<llo_original>
// kernel: tpu_custom_call.1
$region0: #{tpu_custom_call.1}
  #allocation0 [shape = 'u32[]', space=smem, size = 0x4, offset = 0x4, fixed_abs, tag = 'smem constant byte address 0x4 - core index']
  #allocation1 [shape = 'u32[72,128]{1,0:T(1,128)}', space=vmem, size = 0x9000, scoped, tag = 'internal scratch']
  %s0 = inlined_call_operand.hbm [shape: f32[1,8,512], index: 0, kind: input, shape index: {}]
  %s1 = inlined_call_operand.hbm [shape: f32[8,72], index: 1, kind: input, shape index: {}]
  %s2 = inlined_call_operand.hbm [shape: f32[8,512], index: 2, kind: input, shape index: {}]
  %s3 = inlined_call_operand.hbm [shape: f32[8,72], index: 3, kind: input, shape index: {}]
  %s4 = inlined_call_operand.hbm [shape: f32[8,512], index: 4, kind: input, shape index: {}]
  %s5 = inlined_call_operand.hbm [shape: f32[8,8], index: 5, kind: input, shape index: {}]
  %s6 = inlined_call_operand.hbm [shape: f32[16,512], index: 6, kind: input, shape index: {}]
  %s7 = inlined_call_operand.hbm [shape: f32[1,8,512], index: 7, kind: output, shape index: {}]
  %s8 = sld [smem:[#allocation0]]
  $region66: #{tpu_custom_call.1} parent=0
    _
  %s10 = ssub.s32 1, %s8
  %s11 = scalar_select 0, %s10, %s8
  $region1: #{tpu_custom_call.1} parent=0
    #allocation2 [shape = 'u8[16384]{0}', space=vmem, size = 0x4000, scoped, tag = 'input window, operand 0, single buffered']
    #allocation3 [shape = 's32[1]{0}', space=sflag, size = 0x4, scoped, tag = 'scoped memory for tpu_custom_call.1']
    #allocation4 [shape = 's32[1]{0}', space=sflag, size = 0x4, scoped, tag = 'scoped memory for tpu_custom_call.1']
    #allocation5 [shape = 'u8[4096]{0}', space=vmem, size = 0x1000, scoped, tag = 'input window, operand 1, single buffered']
    #allocation6 [shape = 's32[1]{0}', space=sflag, size = 0x4, scoped, tag = 'scoped memory for tpu_custom_call.1']
    #allocation7 [shape = 'u8[16384]{0}', space=vmem, size = 0x4000, scoped, tag = 'input window, operand 2, single buffered']
    #allocation8 [shape = 'u8[4096]{0}', space=vmem, size = 0x1000, scoped, tag = 'input window, operand 3, single buffered']
    #allocation9 [shape = 's32[1]{0}', space=sflag, size = 0x4, scoped, tag = 'scoped memory for tpu_custom_call.1']
    #allocation10 [shape = 'u8[16384]{0}', space=vmem, size = 0x4000, scoped, tag = 'input window, operand 4, single buffered']
    #allocation11 [shape = 'u8[4096]{0}', space=vmem, size = 0x1000, scoped, tag = 'input window, operand 5, single buffered']
    #allocation12 [shape = 's32[1]{0}', space=sflag, size = 0x4, scoped, tag = 'scoped memory for tpu_custom_call.1']
    #allocation13 [shape = 'u8[32768]{0}', space=vmem, size = 0x8000, scoped, tag = 'input window, operand 6, single buffered']
    #allocation14 [shape = 'u8[16384]{0}', space=vmem, size = 0x4000, scoped, tag = 'output window, operand 0, single buffered']
    %12 = vsyncpa [#allocation3], 0
    %13 = vsyncpa [#allocation6], 0
    %14 = vsyncpa [#allocation9], 0
    %15 = vsyncpa [#allocation12], 0
    %16 = vsyncpa [#allocation4], 0
    // Predicated region
    $region2: #{tpu_custom_call.1} parent=1 // pred_check
      _
    $region3: #{tpu_custom_call.1} parent=1 // pred_check_branch
      %18 = sbr.rel (0) target = $region5
    $region4: #{tpu_custom_call.1} parent=1 // pred_region
      %20 = vsyncadd [#allocation3], 0
      %s22 = sshll.u32 %s0, 4
      %s23 = int_to_ptr.hbm [resolvable:$true] %s22
      %s24 = sshll.u32 [#allocation2], 4
      %s25 = int_to_ptr.vmem [resolvable:$true] %s24
      %27 = dma.hbm_to_vmem [thread:$0]  %s23, 512, %s25, [#allocation3]
    $region5: #{tpu_custom_call.1} parent=1 // pred_fallthru
      _
    // Predicated region
    $region6: #{tpu_custom_call.1} parent=1 // pred_check
      _
    $region7: #{tpu_custom_call.1} parent=1 // pred_check_branch
      %29 = sbr.rel (0) target = $region9
    $region8: #{tpu_custom_call.1} parent=1 // pred_region
      %31 = vsyncadd [#allocation6], 0
      %s33 = sshll.u32 %s1, 4
      %s34 = int_to_ptr.hbm [resolvable:$true] %s33
      %s35 = sshll.u32 [#allocation5], 4
      %s36 = int_to_ptr.vmem [resolvable:$true] %s35
      %38 = dma.hbm_to_vmem [thread:$0]  %s34, 128, %s36, [#allocation6]
    $region9: #{tpu_custom_call.1} parent=1 // pred_fallthru
      _
    // Predicated region
    $region10: #{tpu_custom_call.1} parent=1 // pred_check
      _
    $region11: #{tpu_custom_call.1} parent=1 // pred_check_branch
      %40 = sbr.rel (0) target = $region13
    $region12: #{tpu_custom_call.1} parent=1 // pred_region
      %42 = vsyncadd [#allocation6], 0
      %s44 = sshll.u32 %s2, 4
      %s45 = int_to_ptr.hbm [resolvable:$true] %s44
      %s46 = sshll.u32 [#allocation7], 4
      %s47 = int_to_ptr.vmem [resolvable:$true] %s46
      %49 = dma.hbm_to_vmem [thread:$0]  %s45, 512, %s47, [#allocation6]
    $region13: #{tpu_custom_call.1} parent=1 // pred_fallthru
      _
    // Predicated region
    $region14: #{tpu_custom_call.1} parent=1 // pred_check
      _
    $region15: #{tpu_custom_call.1} parent=1 // pred_check_branch
      %51 = sbr.rel (0) target = $region17
    $region16: #{tpu_custom_call.1} parent=1 // pred_region
      %53 = vsyncadd [#allocation9], 0
      %s55 = sshll.u32 %s3, 4
      %s56 = int_to_ptr.hbm [resolvable:$true] %s55
      %s57 = sshll.u32 [#allocation8], 4
      %s58 = int_to_ptr.vmem [resolvable:$true] %s57
      %60 = dma.hbm_to_vmem [thread:$0]  %s56, 128, %s58, [#allocation9]
    $region17: #{tpu_custom_call.1} parent=1 // pred_fallthru
      _
    // Predicated region
    $region18: #{tpu_custom_call.1} parent=1 // pred_check
      _
    $region19: #{tpu_custom_call.1} parent=1 // pred_check_branch
      %62 = sbr.rel (0) target = $region21
    $region20: #{tpu_custom_call.1} parent=1 // pred_region
      %64 = vsyncadd [#allocation9], 0
      %s66 = sshll.u32 %s4, 4
      %s67 = int_to_ptr.hbm [resolvable:$true] %s66
      %s68 = sshll.u32 [#allocation10], 4
      %s69 = int_to_ptr.vmem [resolvable:$true] %s68
      %71 = dma.hbm_to_vmem [thread:$0]  %s67, 512, %s69, [#allocation9]
    $region21: #{tpu_custom_call.1} parent=1 // pred_fallthru
      _
    // Predicated region
    $region22: #{tpu_custom_call.1} parent=1 // pred_check
      _
    $region23: #{tpu_custom_call.1} parent=1 // pred_check_branch
      %73 = sbr.rel (0) target = $region25
    $region24: #{tpu_custom_call.1} parent=1 // pred_region
      %75 = vsyncadd [#allocation12], 0
      %s77 = sshll.u32 %s5, 4
      %s78 = int_to_ptr.hbm [resolvable:$true] %s77
      %s79 = sshll.u32 [#allocation11], 4
      %s80 = int_to_ptr.vmem [resolvable:$true] %s79
      %82 = dma.hbm_to_vmem [thread:$0]  %s78, 128, %s80, [#allocation12]
    $region25: #{tpu_custom_call.1} parent=1 // pred_fallthru
      _
    // Predicated region
    $region26: #{tpu_custom_call.1} parent=1 // pred_check
      _
    $region27: #{tpu_custom_call.1} parent=1 // pred_check_branch
      %84 = sbr.rel (0) target = $region29
    $region28: #{tpu_custom_call.1} parent=1 // pred_region
      %86 = vsyncadd [#allocation12], 0
      %s87 = sshll.u32 %s6, 4
      %s88 = int_to_ptr.hbm [resolvable:$true] %s87
      %s89 = sshll.u32 [#allocation13], 4
      %s90 = int_to_ptr.vmem [resolvable:$true] %s89
      %95 = dma.hbm_to_vmem [thread:$0]  %s88, 1024, %s90, [#allocation12], 512, 512, 32
    $region29: #{tpu_custom_call.1} parent=1 // pred_fallthru
      _
    // Predicated region
    $region30: #{tpu_custom_call.1} parent=1 // pred_check
      _
    $region31: #{tpu_custom_call.1} parent=1 // pred_check_branch
      %97 = sbr.rel (0) target = $region33
    $region32: #{tpu_custom_call.1} parent=1 // pred_region
      %99 = dma.done [#allocation3], 512
    $region33: #{tpu_custom_call.1} parent=1 // pred_fallthru
      _
    // Predicated region
    $region34: #{tpu_custom_call.1} parent=1 // pred_check
      _
    $region35: #{tpu_custom_call.1} parent=1 // pred_check_branch
      %101 = sbr.rel (0) target = $region37
    $region36: #{tpu_custom_call.1} parent=1 // pred_region
      %103 = dma.done [#allocation6], 128
    $region37: #{tpu_custom_call.1} parent=1 // pred_fallthru
      _
    // Predicated region
    $region38: #{tpu_custom_call.1} parent=1 // pred_check
      _
    $region39: #{tpu_custom_call.1} parent=1 // pred_check_branch
      %105 = sbr.rel (0) target = $region41
    $region40: #{tpu_custom_call.1} parent=1 // pred_region
      %107 = dma.done [#allocation6], 512
    $region41: #{tpu_custom_call.1} parent=1 // pred_fallthru
      _
    // Predicated region
    $region42: #{tpu_custom_call.1} parent=1 // pred_check
      _
    $region43: #{tpu_custom_call.1} parent=1 // pred_check_branch
      %109 = sbr.rel (0) target = $region45
    $region44: #{tpu_custom_call.1} parent=1 // pred_region
      %111 = dma.done [#allocation9], 128
    $region45: #{tpu_custom_call.1} parent=1 // pred_fallthru
      _
    // Predicated region
    $region46: #{tpu_custom_call.1} parent=1 // pred_check
      _
    $region47: #{tpu_custom_call.1} parent=1 // pred_check_branch
      %113 = sbr.rel (0) target = $region49
    $region48: #{tpu_custom_call.1} parent=1 // pred_region
      %115 = dma.done [#allocation9], 512
    $region49: #{tpu_custom_call.1} parent=1 // pred_fallthru
      _
    // Predicated region
    $region50: #{tpu_custom_call.1} parent=1 // pred_check
      _
    $region51: #{tpu_custom_call.1} parent=1 // pred_check_branch
      %117 = sbr.rel (0) target = $region53
    $region52: #{tpu_custom_call.1} parent=1 // pred_region
      %119 = dma.done [#allocation12], 128
    $region53: #{tpu_custom_call.1} parent=1 // pred_fallthru
      _
    // Predicated region
    $region54: #{tpu_custom_call.1} parent=1 // pred_check
      _
    $region55: #{tpu_custom_call.1} parent=1 // pred_check_branch
      %121 = sbr.rel (0) target = $region57
    $region56: #{tpu_custom_call.1} parent=1 // pred_region
      %123 = dma.done [#allocation12], 1024
    $region57: #{tpu_custom_call.1} parent=1 // pred_fallthru
      _
    %v124 = vld [vmem:[#allocation2] sm:$0xff]
    %v125 = vld [vmem:[#allocation2 + $0x8] sm:$0xff]
    %v126 = vld [vmem:[#allocation2 + $0x10] sm:$0xff]
    %v127 = vld [vmem:[#allocation2 + $0x18] sm:$0xff]
    %v128 = vld [vmem:[#allocation13] sm:$0xff]
    %v129 = vld [vmem:[#allocation13 + $0x8] sm:$0xff]
    %v130 = vld [vmem:[#allocation13 + $0x10] sm:$0xff]
    %v131 = vld [vmem:[#allocation13 + $0x18] sm:$0xff]
    %v132 = vld [vmem:[#allocation13 + $0x20] sm:$0xff]
    %v133 = vld [vmem:[#allocation13 + $0x28] sm:$0xff]
    %v134 = vld [vmem:[#allocation13 + $0x30] sm:$0xff]
    %v135 = vld [vmem:[#allocation13 + $0x38] sm:$0xff]
    %v136 = vld [vmem:[#allocation11] sm:$0xff]
    %vm137 = vcmask 64512
    %v139 = vsel %vm137, %v136, 0
    %141 = vmatpush.msra.mxu0 0.0
    %142 = vmatpush.msra.mxu0 0.0
    %143 = vmatpush.msra.mxu0 0.0
    %144 = vmatpush.msra.mxu0 0.0
    %145 = vmatpush.msra.mxu0 0.0
    %146 = vmatpush.msra.mxu0 0.0
    %147 = vmatpush.msra.mxu0 0.0
    %148 = vmatpush.msra.mxu0 0.0
    %149 = vmatpush.msra.mxu0 0.0
    %150 = vmatpush.msra.mxu0 0.0
    %151 = vmatpush.msra.mxu0 0.0
    %152 = vmatpush.msra.mxu0 0.0
    %153 = vmatpush.msra.mxu0 0.0
    %154 = vmatpush.msra.mxu0 0.0
    %155 = vmatpush.msra.mxu0 0.0
    %156 = vmatpush.msra.mxu0 %v124
    %157 = vmatmul.f32.gmra.mxu0 %v139
    %v158 = vpop.f32.mrf.mxu0
    %v159 = vadd.f32 0.0, %v158
    %160 = vdwg.mxu0
    %161 = vmatpush.msra.mxu0 0.0
    %162 = vmatpush.msra.mxu0 0.0
    %163 = vmatpush.msra.mxu0 0.0
    %164 = vmatpush.msra.mxu0 0.0
    %165 = vmatpush.msra.mxu0 0.0
    %166 = vmatpush.msra.mxu0 0.0
    %167 = vmatpush.msra.mxu0 0.0
    %168 = vmatpush.msra.mxu0 0.0
    %169 = vmatpush.msra.mxu0 0.0
    %170 = vmatpush.msra.mxu0 0.0
    %171 = vmatpush.msra.mxu0 0.0
    %172 = vmatpush.msra.mxu0 0.0
    %173 = vmatpush.msra.mxu0 0.0
    %174 = vmatpush.msra.mxu0 0.0
    %175 = vmatpush.msra.mxu0 0.0
    %176 = vmatpush.msra.mxu0 %v125
    %177 = vmatmul.f32.gmra.mxu0 %v139
    %v178 = vpop.f32.mrf.mxu0
    %v179 = vadd.f32 0.0, %v178
    %180 = vdwg.mxu0
    %181 = vmatpush.msra.mxu0 0.0
    %182 = vmatpush.msra.mxu0 0.0
    %183 = vmatpush.msra.mxu0 0.0
    %184 = vmatpush.msra.mxu0 0.0
    %185 = vmatpush.msra.mxu0 0.0
    %186 = vmatpush.msra.mxu0 0.0
    %187 = vmatpush.msra.mxu0 0.0
    %188 = vmatpush.msra.mxu0 0.0
    %189 = vmatpush.msra.mxu0 0.0
    %190 = vmatpush.msra.mxu0 0.0
    %191 = vmatpush.msra.mxu0 0.0
    %192 = vmatpush.msra.mxu0 0.0
    %193 = vmatpush.msra.mxu0 0.0
    %194 = vmatpush.msra.mxu0 0.0
    %195 = vmatpush.msra.mxu0 0.0
    %196 = vmatpush.msra.mxu0 %v126
    %197 = vmatmul.f32.gmra.mxu0 %v139
    %v198 = vpop.f32.mrf.mxu0
    %v199 = vadd.f32 0.0, %v198
    %200 = vdwg.mxu0
    %201 = vmatpush.msra.mxu0 0.0
    %202 = vmatpush.msra.mxu0 0.0
    %203 = vmatpush.msra.mxu0 0.0
    %204 = vmatpush.msra.mxu0 0.0
    %205 = vmatpush.msra.mxu0 0.0
    %206 = vmatpush.msra.mxu0 0.0
    %207 = vmatpush.msra.mxu0 0.0
    %208 = vmatpush.msra.mxu0 0.0
    %209 = vmatpush.msra.mxu0 0.0
    %210 = vmatpush.msra.mxu0 0.0
    %211 = vmatpush.msra.mxu0 0.0
    %212 = vmatpush.msra.mxu0 0.0
    %213 = vmatpush.msra.mxu0 0.0
    %214 = vmatpush.msra.mxu0 0.0
    %215 = vmatpush.msra.mxu0 0.0
    %216 = vmatpush.msra.mxu0 %v127
    %217 = vmatmul.f32.gmra.mxu0 %v139
    %v218 = vpop.f32.mrf.mxu0
    %v219 = vadd.f32 0.0, %v218
    %220 = vdwg.mxu0
    %vm221 = vcmp.gt.f32.partialorder %v124, 0.0
    %vm222 = vcmp.gt.f32.partialorder %v125, 0.0
    %vm223 = vcmp.gt.f32.partialorder %v126, 0.0
    %vm224 = vcmp.gt.f32.partialorder %v127, 0.0
    %v225 = vmul.f32 %v124, 0.01
    %v226 = vmul.f32 %v125, 0.01
    %v227 = vmul.f32 %v126, 0.01
    %v228 = vmul.f32 %v127, 0.01
    %v229 = vsel %vm221, %v124, %v225
    %v230 = vsel %vm222, %v125, %v226
    %v231 = vsel %vm223, %v126, %v227
    %v232 = vsel %vm224, %v127, %v228
    %v233 = vld [vmem:[#allocation5] sm:$0xff]
    %v234 = vld [vmem:[#allocation7] sm:$0xff]
    %v235 = vld [vmem:[#allocation7 + $0x8] sm:$0xff]
    %v236 = vld [vmem:[#allocation7 + $0x10] sm:$0xff]
    %v237 = vld [vmem:[#allocation7 + $0x18] sm:$0xff]
    %238 = vrot.lane.b32.xlu0 %v229, 34
    %v239 = vpop.permute.xlu0 %238
    %240 = vrot.lane.b32.xlu0 %v230, 34
    %v241 = vpop.permute.xlu0 %240
    %242 = vrot.lane.b32.xlu0 %v231, 34
    %v243 = vpop.permute.xlu0 %242
    %244 = vrot.lane.b32.xlu0 %v232, 34
    %v245 = vpop.permute.xlu0 %244
    %v246 = vlaneseq
    %v247 = vand.u32 %v246, 127
    %vm248 = vcmp.lt.s32.totalorder %v247, 34
    %v249 = vsel %vm248, %v243, %v245
    %v250 = vsel %vm248, %v241, %v243
    %v251 = vsel %vm248, %v239, %v241
    %v252 = vsel %vm248, %v245, %v239
    %v253 = vperm.slane %v128, 0
    %v254 = vperm.slane %v129, 0
    %v255 = vperm.slane %v130, 0
    %v256 = vperm.slane %v131, 0
    %v257 = vmul.f32 %v252, %v253
    %v258 = vmul.f32 %v251, %v254
    %v259 = vmul.f32 %v250, %v255
    %v260 = vmul.f32 %v249, %v256
    %261 = vrot.lane.b32.xlu0 %v229, 32
    %v262 = vpop.permute.xlu0 %261
    %263 = vrot.lane.b32.xlu0 %v230, 32
    %v264 = vpop.permute.xlu0 %263
    %265 = vrot.lane.b32.xlu0 %v231, 32
    %v266 = vpop.permute.xlu0 %265
    %267 = vrot.lane.b32.xlu0 %v232, 32
    %v268 = vpop.permute.xlu0 %267
    %vm269 = vcmp.lt.s32.totalorder %v247, 32
    %v270 = vsel %vm269, %v266, %v268
    %v271 = vsel %vm269, %v264, %v266
    %v272 = vsel %vm269, %v262, %v264
    %v273 = vsel %vm269, %v268, %v262
    %v274 = vperm.slane %v128, 1
    %v275 = vperm.slane %v129, 1
    %v276 = vperm.slane %v130, 1
    %v277 = vperm.slane %v131, 1
    %v278 = vmul.f32 %v273, %v274
    %v279 = vmul.f32 %v272, %v275
    %v280 = vmul.f32 %v271, %v276
    %v281 = vmul.f32 %v270, %v277
    %282 = vrot.lane.b32.xlu0 %v229, 30
    %v283 = vpop.permute.xlu0 %282
    %284 = vrot.lane.b32.xlu0 %v230, 30
    %v285 = vpop.permute.xlu0 %284
    %286 = vrot.lane.b32.xlu0 %v231, 30
    %v287 = vpop.permute.xlu0 %286
    %288 = vrot.lane.b32.xlu0 %v232, 30
    %v289 = vpop.permute.xlu0 %288
    %vm290 = vcmp.lt.s32.totalorder %v247, 30
    %v291 = vsel %vm290, %v287, %v289
    %v292 = vsel %vm290, %v285, %v287
    %v293 = vsel %vm290, %v283, %v285
    %v294 = vsel %vm290, %v289, %v283
    %v295 = vperm.slane %v128, 2
    %v296 = vperm.slane %v129, 2
    %v297 = vperm.slane %v130, 2
    %v298 = vperm.slane %v131, 2
    %v299 = vmul.f32 %v294, %v295
    %v300 = vmul.f32 %v293, %v296
    %v301 = vmul.f32 %v292, %v297
    %v302 = vmul.f32 %v291, %v298
    %303 = vrot.lane.b32.xlu0 %v229, 2
    %v304 = vpop.permute.xlu0 %303
    %305 = vrot.lane.b32.xlu0 %v230, 2
    %v306 = vpop.permute.xlu0 %305
    %307 = vrot.lane.b32.xlu0 %v231, 2
    %v308 = vpop.permute.xlu0 %307
    %309 = vrot.lane.b32.xlu0 %v232, 2
    %v310 = vpop.permute.xlu0 %309
    %vm311 = vcmp.lt.s32.totalorder %v247, 2
    %v312 = vsel %vm311, %v308, %v310
    %v313 = vsel %vm311, %v306, %v308
    %v314 = vsel %vm311, %v304, %v306
    %v315 = vsel %vm311, %v310, %v304
    %v316 = vperm.slane %v128, 3
    %v317 = vperm.slane %v129, 3
    %v318 = vperm.slane %v130, 3
    %v319 = vperm.slane %v131, 3
    %v320 = vmul.f32 %v315, %v316
    %v321 = vmul.f32 %v314, %v317
    %v322 = vmul.f32 %v313, %v318
    %v323 = vmul.f32 %v312, %v319
    %324 = vrot.lane.b32.xlu0 %v229, 126
    %v325 = vpop.permute.xlu0 %324
    %326 = vrot.lane.b32.xlu0 %v230, 126
    %v327 = vpop.permute.xlu0 %326
    %328 = vrot.lane.b32.xlu0 %v231, 126
    %v329 = vpop.permute.xlu0 %328
    %330 = vrot.lane.b32.xlu0 %v232, 126
    %v331 = vpop.permute.xlu0 %330
    %vm332 = vcmp.lt.s32.totalorder %v247, 126
    %v333 = vsel %vm332, %v329, %v331
    %v334 = vsel %vm332, %v327, %v329
    %v335 = vsel %vm332, %v325, %v327
    %v336 = vsel %vm332, %v331, %v325
    %v337 = vperm.slane %v128, 4
    %v338 = vperm.slane %v129, 4
    %v339 = vperm.slane %v130, 4
    %v340 = vperm.slane %v131, 4
    %v341 = vmul.f32 %v335, %v337
    %v342 = vmul.f32 %v334, %v338
    %v343 = vmul.f32 %v333, %v339
    %v344 = vmul.f32 %v336, %v340
    %345 = vrot.lane.b32.xlu0 %v229, 98
    %v346 = vpop.permute.xlu0 %345
    %347 = vrot.lane.b32.xlu0 %v230, 98
    %v348 = vpop.permute.xlu0 %347
    %349 = vrot.lane.b32.xlu0 %v231, 98
    %v350 = vpop.permute.xlu0 %349
    %351 = vrot.lane.b32.xlu0 %v232, 98
    %v352 = vpop.permute.xlu0 %351
    %vm353 = vcmp.lt.s32.totalorder %v247, 98
    %v354 = vsel %vm353, %v350, %v352
    %v355 = vsel %vm353, %v348, %v350
    %v356 = vsel %vm353, %v346, %v348
    %v357 = vsel %vm353, %v352, %v346
    %v358 = vperm.slane %v128, 5
    %v359 = vperm.slane %v129, 5
    %v360 = vperm.slane %v130, 5
    %v361 = vperm.slane %v131, 5
    %v362 = vmul.f32 %v356, %v358
    %v363 = vmul.f32 %v355, %v359
    %v364 = vmul.f32 %v354, %v360
    %v365 = vmul.f32 %v357, %v361
    %366 = vrot.lane.b32.xlu0 %v229, 96
    %v367 = vpop.permute.xlu0 %366
    %368 = vrot.lane.b32.xlu0 %v230, 96
    %v369 = vpop.permute.xlu0 %368
    %370 = vrot.lane.b32.xlu0 %v231, 96
    %v371 = vpop.permute.xlu0 %370
    %372 = vrot.lane.b32.xlu0 %v232, 96
    %v373 = vpop.permute.xlu0 %372
    %vm374 = vcmp.lt.s32.totalorder %v247, 96
    %v375 = vsel %vm374, %v371, %v373
    %v376 = vsel %vm374, %v369, %v371
    %v377 = vsel %vm374, %v367, %v369
    %v378 = vsel %vm374, %v373, %v367
    %v379 = vperm.slane %v128, 6
    %v380 = vperm.slane %v129, 6
    %v381 = vperm.slane %v130, 6
    %v382 = vperm.slane %v131, 6
    %v383 = vmul.f32 %v377, %v379
    %v384 = vmul.f32 %v376, %v380
    %v385 = vmul.f32 %v375, %v381
    %v386 = vmul.f32 %v378, %v382
    %387 = vrot.lane.b32.xlu0 %v229, 94
    %v388 = vpop.permute.xlu0 %387
    %389 = vrot.lane.b32.xlu0 %v230, 94
    %v390 = vpop.permute.xlu0 %389
    %391 = vrot.lane.b32.xlu0 %v231, 94
    %v392 = vpop.permute.xlu0 %391
    %393 = vrot.lane.b32.xlu0 %v232, 94
    %v394 = vpop.permute.xlu0 %393
    %vm395 = vcmp.lt.s32.totalorder %v247, 94
    %v396 = vsel %vm395, %v392, %v394
    %v397 = vsel %vm395, %v390, %v392
    %v398 = vsel %vm395, %v388, %v390
    %v399 = vsel %vm395, %v394, %v388
    %v400 = vperm.slane %v128, 7
    %v401 = vperm.slane %v129, 7
    %v402 = vperm.slane %v130, 7
    %v403 = vperm.slane %v131, 7
    %v404 = vmul.f32 %v398, %v400
    %v405 = vmul.f32 %v397, %v401
    %v406 = vmul.f32 %v396, %v402
    %v407 = vmul.f32 %v399, %v403
    %vm408 = vcmask 588800
    %v410 = vsel %vm408, %v233, 0
    %412 = vmatpush.msra.mxu0 0.0
    %413 = vmatpush.msra.mxu0 0.0
    %414 = vmatpush.msra.mxu0 0.0
    %415 = vmatpush.msra.mxu0 0.0
    %416 = vmatpush.msra.mxu0 0.0
    %417 = vmatpush.msra.mxu0 0.0
    %418 = vmatpush.msra.mxu0 0.0
    %419 = vmatpush.msra.mxu0 %v404
    %420 = vmatpush.msra.mxu0 %v383
    %421 = vmatpush.msra.mxu0 %v362
    %422 = vmatpush.msra.mxu0 %v341
    %423 = vmatpush.msra.mxu0 %v229
    %424 = vmatpush.msra.mxu0 %v320
    %425 = vmatpush.msra.mxu0 %v299
    %426 = vmatpush.msra.mxu0 %v278
    %427 = vmatpush.msra.mxu0 %v257
    %428 = vmatmul.f32.gmra.mxu0 %v410
    %v429 = vpop.f32.mrf.mxu0
    %v430 = vadd.f32 %v234, %v429
    %431 = vdwg.mxu0
    %432 = vmatpush.msra.mxu0 0.0
    %433 = vmatpush.msra.mxu0 0.0
    %434 = vmatpush.msra.mxu0 0.0
    %435 = vmatpush.msra.mxu0 0.0
    %436 = vmatpush.msra.mxu0 0.0
    %437 = vmatpush.msra.mxu0 0.0
    %438 = vmatpush.msra.mxu0 0.0
    %439 = vmatpush.msra.mxu0 %v405
    %440 = vmatpush.msra.mxu0 %v384
    %441 = vmatpush.msra.mxu0 %v363
    %442 = vmatpush.msra.mxu0 %v342
    %443 = vmatpush.msra.mxu0 %v230
    %444 = vmatpush.msra.mxu0 %v321
    %445 = vmatpush.msra.mxu0 %v300
    %446 = vmatpush.msra.mxu0 %v279
    %447 = vmatpush.msra.mxu0 %v258
    %448 = vmatmul.f32.gmra.mxu0 %v410
    %v449 = vpop.f32.mrf.mxu0
    %v450 = vadd.f32 %v235, %v449
    %451 = vdwg.mxu0
    %452 = vmatpush.msra.mxu0 0.0
    %453 = vmatpush.msra.mxu0 0.0
    %454 = vmatpush.msra.mxu0 0.0
    %455 = vmatpush.msra.mxu0 0.0
    %456 = vmatpush.msra.mxu0 0.0
    %457 = vmatpush.msra.mxu0 0.0
    %458 = vmatpush.msra.mxu0 0.0
    %459 = vmatpush.msra.mxu0 %v406
    %460 = vmatpush.msra.mxu0 %v385
    %461 = vmatpush.msra.mxu0 %v364
    %462 = vmatpush.msra.mxu0 %v343
    %463 = vmatpush.msra.mxu0 %v231
    %464 = vmatpush.msra.mxu0 %v322
    %465 = vmatpush.msra.mxu0 %v301
    %466 = vmatpush.msra.mxu0 %v280
    %467 = vmatpush.msra.mxu0 %v259
    %468 = vmatmul.f32.gmra.mxu0 %v410
    %v469 = vpop.f32.mrf.mxu0
    %v470 = vadd.f32 %v236, %v469
    %471 = vdwg.mxu0
    %472 = vmatpush.msra.mxu0 0.0
    %473 = vmatpush.msra.mxu0 0.0
    %474 = vmatpush.msra.mxu0 0.0
    %475 = vmatpush.msra.mxu0 0.0
    %476 = vmatpush.msra.mxu0 0.0
    %477 = vmatpush.msra.mxu0 0.0
    %478 = vmatpush.msra.mxu0 0.0
    %479 = vmatpush.msra.mxu0 %v407
    %480 = vmatpush.msra.mxu0 %v386
    %481 = vmatpush.msra.mxu0 %v365
    %482 = vmatpush.msra.mxu0 %v344
    %483 = vmatpush.msra.mxu0 %v232
    %484 = vmatpush.msra.mxu0 %v323
    %485 = vmatpush.msra.mxu0 %v302
    %486 = vmatpush.msra.mxu0 %v281
    %487 = vmatpush.msra.mxu0 %v260
    %488 = vmatmul.f32.gmra.mxu0 %v410
    %v489 = vpop.f32.mrf.mxu0
    %v490 = vadd.f32 %v237, %v489
    %491 = vdwg.mxu0
    %vm492 = vcmp.gt.f32.partialorder %v430, 0.0
    %vm493 = vcmp.gt.f32.partialorder %v450, 0.0
    %vm494 = vcmp.gt.f32.partialorder %v470, 0.0
    %vm495 = vcmp.gt.f32.partialorder %v490, 0.0
    %v496 = vmul.f32 %v430, 0.01
    %v497 = vmul.f32 %v450, 0.01
    %v498 = vmul.f32 %v470, 0.01
    %v499 = vmul.f32 %v490, 0.01
    %v500 = vsel %vm492, %v430, %v496
    %v501 = vsel %vm493, %v450, %v497
    %v502 = vsel %vm494, %v470, %v498
    %v503 = vsel %vm495, %v490, %v499
    %v504 = vld [vmem:[#allocation8] sm:$0xff]
    %v505 = vld [vmem:[#allocation10] sm:$0xff]
    %v506 = vld [vmem:[#allocation10 + $0x8] sm:$0xff]
    %v507 = vld [vmem:[#allocation10 + $0x10] sm:$0xff]
    %v508 = vld [vmem:[#allocation10 + $0x18] sm:$0xff]
    %509 = vrot.lane.b32.xlu0 %v500, 17
    %v510 = vpop.permute.xlu0 %509
    %511 = vrot.lane.b32.xlu0 %v501, 17
    %v512 = vpop.permute.xlu0 %511
    %513 = vrot.lane.b32.xlu0 %v502, 17
    %v514 = vpop.permute.xlu0 %513
    %515 = vrot.lane.b32.xlu0 %v503, 17
    %v516 = vpop.permute.xlu0 %515
    %vm517 = vcmp.lt.s32.totalorder %v247, 17
    %v518 = vsel %vm517, %v514, %v516
    %v519 = vsel %vm517, %v512, %v514
    %v520 = vsel %vm517, %v510, %v512
    %v521 = vsel %vm517, %v516, %v510
    %v522 = vperm.slane %v132, 0
    %v523 = vperm.slane %v133, 0
    %v524 = vperm.slane %v134, 0
    %v525 = vperm.slane %v135, 0
    %v526 = vmul.f32 %v521, %v522
    %v527 = vmul.f32 %v520, %v523
    %v528 = vmul.f32 %v519, %v524
    %v529 = vmul.f32 %v518, %v525
    %530 = vrot.lane.b32.xlu0 %v500, 16
    %v531 = vpop.permute.xlu0 %530
    %532 = vrot.lane.b32.xlu0 %v501, 16
    %v533 = vpop.permute.xlu0 %532
    %534 = vrot.lane.b32.xlu0 %v502, 16
    %v535 = vpop.permute.xlu0 %534
    %536 = vrot.lane.b32.xlu0 %v503, 16
    %v537 = vpop.permute.xlu0 %536
    %vm538 = vcmp.lt.s32.totalorder %v247, 16
    %v539 = vsel %vm538, %v535, %v537
    %v540 = vsel %vm538, %v533, %v535
    %v541 = vsel %vm538, %v531, %v533
    %v542 = vsel %vm538, %v537, %v531
    %v543 = vperm.slane %v132, 1
    %v544 = vperm.slane %v133, 1
    %v545 = vperm.slane %v134, 1
    %v546 = vperm.slane %v135, 1
    %v547 = vmul.f32 %v542, %v543
    %v548 = vmul.f32 %v541, %v544
    %v549 = vmul.f32 %v540, %v545
    %v550 = vmul.f32 %v539, %v546
    %551 = vrot.lane.b32.xlu0 %v500, 15
    %v552 = vpop.permute.xlu0 %551
    %553 = vrot.lane.b32.xlu0 %v501, 15
    %v554 = vpop.permute.xlu0 %553
    %555 = vrot.lane.b32.xlu0 %v502, 15
    %v556 = vpop.permute.xlu0 %555
    %557 = vrot.lane.b32.xlu0 %v503, 15
    %v558 = vpop.permute.xlu0 %557
    %vm559 = vcmp.lt.s32.totalorder %v247, 15
    %v560 = vsel %vm559, %v556, %v558
    %v561 = vsel %vm559, %v554, %v556
    %v562 = vsel %vm559, %v552, %v554
    %v563 = vsel %vm559, %v558, %v552
    %v564 = vperm.slane %v132, 2
    %v565 = vperm.slane %v133, 2
    %v566 = vperm.slane %v134, 2
    %v567 = vperm.slane %v135, 2
    %v568 = vmul.f32 %v563, %v564
    %v569 = vmul.f32 %v562, %v565
    %v570 = vmul.f32 %v561, %v566
    %v571 = vmul.f32 %v560, %v567
    %572 = vrot.lane.b32.xlu0 %v500, 1
    %v573 = vpop.permute.xlu0 %572
    %574 = vrot.lane.b32.xlu0 %v501, 1
    %v575 = vpop.permute.xlu0 %574
    %576 = vrot.lane.b32.xlu0 %v502, 1
    %v577 = vpop.permute.xlu0 %576
    %578 = vrot.lane.b32.xlu0 %v503, 1
    %v579 = vpop.permute.xlu0 %578
    %vm580 = vcmp.lt.s32.totalorder %v247, 1
    %v581 = vsel %vm580, %v577, %v579
    %v582 = vsel %vm580, %v575, %v577
    %v583 = vsel %vm580, %v573, %v575
    %v584 = vsel %vm580, %v579, %v573
    %v585 = vperm.slane %v132, 3
    %v586 = vperm.slane %v133, 3
    %v587 = vperm.slane %v134, 3
    %v588 = vperm.slane %v135, 3
    %v589 = vmul.f32 %v584, %v585
    %v590 = vmul.f32 %v583, %v586
    %v591 = vmul.f32 %v582, %v587
    %v592 = vmul.f32 %v581, %v588
    %593 = vrot.lane.b32.xlu0 %v500, 127
    %v594 = vpop.permute.xlu0 %593
    %595 = vrot.lane.b32.xlu0 %v501, 127
    %v596 = vpop.permute.xlu0 %595
    %597 = vrot.lane.b32.xlu0 %v502, 127
    %v598 = vpop.permute.xlu0 %597
    %599 = vrot.lane.b32.xlu0 %v503, 127
    %v600 = vpop.permute.xlu0 %599
    %vm601 = vcmp.lt.s32.totalorder %v247, 127
    %v602 = vsel %vm601, %v598, %v600
    %v603 = vsel %vm601, %v596, %v598
    %v604 = vsel %vm601, %v594, %v596
    %v605 = vsel %vm601, %v600, %v594
    %v606 = vperm.slane %v132, 4
    %v607 = vperm.slane %v133, 4
    %v608 = vperm.slane %v134, 4
    %v609 = vperm.slane %v135, 4
    %v610 = vmul.f32 %v604, %v606
    %v611 = vmul.f32 %v603, %v607
    %v612 = vmul.f32 %v602, %v608
    %v613 = vmul.f32 %v605, %v609
    %614 = vrot.lane.b32.xlu0 %v500, 113
    %v615 = vpop.permute.xlu0 %614
    %616 = vrot.lane.b32.xlu0 %v501, 113
    %v617 = vpop.permute.xlu0 %616
    %618 = vrot.lane.b32.xlu0 %v502, 113
    %v619 = vpop.permute.xlu0 %618
    %620 = vrot.lane.b32.xlu0 %v503, 113
    %v621 = vpop.permute.xlu0 %620
    %vm622 = vcmp.lt.s32.totalorder %v247, 113
    %v623 = vsel %vm622, %v619, %v621
    %v624 = vsel %vm622, %v617, %v619
    %v625 = vsel %vm622, %v615, %v617
    %v626 = vsel %vm622, %v621, %v615
    %v627 = vperm.slane %v132, 5
    %v628 = vperm.slane %v133, 5
    %v629 = vperm.slane %v134, 5
    %v630 = vperm.slane %v135, 5
    %v631 = vmul.f32 %v625, %v627
    %v632 = vmul.f32 %v624, %v628
    %v633 = vmul.f32 %v623, %v629
    %v634 = vmul.f32 %v626, %v630
    %635 = vrot.lane.b32.xlu0 %v500, 112
    %v636 = vpop.permute.xlu0 %635
    %637 = vrot.lane.b32.xlu0 %v501, 112
    %v638 = vpop.permute.xlu0 %637
    %639 = vrot.lane.b32.xlu0 %v502, 112
    %v640 = vpop.permute.xlu0 %639
    %641 = vrot.lane.b32.xlu0 %v503, 112
    %v642 = vpop.permute.xlu0 %641
    %vm643 = vcmp.lt.s32.totalorder %v247, 112
    %v644 = vsel %vm643, %v640, %v642
    %v645 = vsel %vm643, %v638, %v640
    %v646 = vsel %vm643, %v636, %v638
    %v647 = vsel %vm643, %v642, %v636
    %v648 = vperm.slane %v132, 6
    %v649 = vperm.slane %v133, 6
    %v650 = vperm.slane %v134, 6
    %v651 = vperm.slane %v135, 6
    %v652 = vmul.f32 %v646, %v648
    %v653 = vmul.f32 %v645, %v649
    %v654 = vmul.f32 %v644, %v650
    %v655 = vmul.f32 %v647, %v651
    %656 = vrot.lane.b32.xlu0 %v500, 111
    %v657 = vpop.permute.xlu0 %656
    %658 = vrot.lane.b32.xlu0 %v501, 111
    %v659 = vpop.permute.xlu0 %658
    %660 = vrot.lane.b32.xlu0 %v502, 111
    %v661 = vpop.permute.xlu0 %660
    %662 = vrot.lane.b32.xlu0 %v503, 111
    %v663 = vpop.permute.xlu0 %662
    %vm664 = vcmp.lt.s32.totalorder %v247, 111
    %v665 = vsel %vm664, %v661, %v663
    %v666 = vsel %vm664, %v659, %v661
    %v667 = vsel %vm664, %v657, %v659
    %v668 = vsel %vm664, %v663, %v657
    %v669 = vperm.slane %v132, 7
    %v670 = vperm.slane %v133, 7
    %v671 = vperm.slane %v134, 7
    %v672 = vperm.slane %v135, 7
    %v673 = vmul.f32 %v667, %v669
    %v674 = vmul.f32 %v666, %v670
    %v675 = vmul.f32 %v665, %v671
    %v676 = vmul.f32 %v668, %v672
    %v678 = vsel %vm408, %v504, 0
    %680 = vmatpush.msra.mxu0 0.0
    %681 = vmatpush.msra.mxu0 0.0
    %682 = vmatpush.msra.mxu0 0.0
    %683 = vmatpush.msra.mxu0 0.0
    %684 = vmatpush.msra.mxu0 0.0
    %685 = vmatpush.msra.mxu0 0.0
    %686 = vmatpush.msra.mxu0 0.0
    %687 = vmatpush.msra.mxu0 %v673
    %688 = vmatpush.msra.mxu0 %v652
    %689 = vmatpush.msra.mxu0 %v631
    %690 = vmatpush.msra.mxu0 %v610
    %691 = vmatpush.msra.mxu0 %v500
    %692 = vmatpush.msra.mxu0 %v589
    %693 = vmatpush.msra.mxu0 %v568
    %694 = vmatpush.msra.mxu0 %v547
    %695 = vmatpush.msra.mxu0 %v526
    %696 = vmatmul.f32.gmra.mxu0 %v678
    %v697 = vpop.f32.mrf.mxu0
    %v698 = vadd.f32 %v505, %v697
    %699 = vdwg.mxu0
    %700 = vmatpush.msra.mxu0 0.0
    %701 = vmatpush.msra.mxu0 0.0
    %702 = vmatpush.msra.mxu0 0.0
    %703 = vmatpush.msra.mxu0 0.0
    %704 = vmatpush.msra.mxu0 0.0
    %705 = vmatpush.msra.mxu0 0.0
    %706 = vmatpush.msra.mxu0 0.0
    %707 = vmatpush.msra.mxu0 %v674
    %708 = vmatpush.msra.mxu0 %v653
    %709 = vmatpush.msra.mxu0 %v632
    %710 = vmatpush.msra.mxu0 %v611
    %711 = vmatpush.msra.mxu0 %v501
    %712 = vmatpush.msra.mxu0 %v590
    %713 = vmatpush.msra.mxu0 %v569
    %714 = vmatpush.msra.mxu0 %v548
    %715 = vmatpush.msra.mxu0 %v527
    %716 = vmatmul.f32.gmra.mxu0 %v678
    %v717 = vpop.f32.mrf.mxu0
    %v718 = vadd.f32 %v506, %v717
    %719 = vdwg.mxu0
    %720 = vmatpush.msra.mxu0 0.0
    %721 = vmatpush.msra.mxu0 0.0
    %722 = vmatpush.msra.mxu0 0.0
    %723 = vmatpush.msra.mxu0 0.0
    %724 = vmatpush.msra.mxu0 0.0
    %725 = vmatpush.msra.mxu0 0.0
    %726 = vmatpush.msra.mxu0 0.0
    %727 = vmatpush.msra.mxu0 %v675
    %728 = vmatpush.msra.mxu0 %v654
    %729 = vmatpush.msra.mxu0 %v633
    %730 = vmatpush.msra.mxu0 %v612
    %731 = vmatpush.msra.mxu0 %v502
    %732 = vmatpush.msra.mxu0 %v591
    %733 = vmatpush.msra.mxu0 %v570
    %734 = vmatpush.msra.mxu0 %v549
    %735 = vmatpush.msra.mxu0 %v528
    %736 = vmatmul.f32.gmra.mxu0 %v678
    %v737 = vpop.f32.mrf.mxu0
    %v738 = vadd.f32 %v507, %v737
    %739 = vdwg.mxu0
    %740 = vmatpush.msra.mxu0 0.0
    %741 = vmatpush.msra.mxu0 0.0
    %742 = vmatpush.msra.mxu0 0.0
    %743 = vmatpush.msra.mxu0 0.0
    %744 = vmatpush.msra.mxu0 0.0
    %745 = vmatpush.msra.mxu0 0.0
    %746 = vmatpush.msra.mxu0 0.0
    %747 = vmatpush.msra.mxu0 %v676
    %748 = vmatpush.msra.mxu0 %v655
    %749 = vmatpush.msra.mxu0 %v634
    %750 = vmatpush.msra.mxu0 %v613
    %751 = vmatpush.msra.mxu0 %v503
    %752 = vmatpush.msra.mxu0 %v592
    %753 = vmatpush.msra.mxu0 %v571
    %754 = vmatpush.msra.mxu0 %v550
    %755 = vmatpush.msra.mxu0 %v529
    %756 = vmatmul.f32.gmra.mxu0 %v678
    %v757 = vpop.f32.mrf.mxu0
    %v758 = vadd.f32 %v508, %v757
    %759 = vdwg.mxu0
    %v760 = vadd.f32 %v698, %v159
    %v761 = vadd.f32 %v718, %v179
    %v762 = vadd.f32 %v738, %v199
    %v763 = vadd.f32 %v758, %v219
    %764 = vst [vmem:[#allocation14] sm:$0xff] %v760
    %765 = vst [vmem:[#allocation14 + $0x8] sm:$0xff] %v761
    %766 = vst [vmem:[#allocation14 + $0x10] sm:$0xff] %v762
    %767 = vst [vmem:[#allocation14 + $0x18] sm:$0xff] %v763
    // Predicated region
    $region58: #{tpu_custom_call.1} parent=1 // pred_check
      _
    $region59: #{tpu_custom_call.1} parent=1 // pred_check_branch
      %769 = sbr.rel (0) target = $region61
    $region60: #{tpu_custom_call.1} parent=1 // pred_region
      %771 = vsyncadd [#allocation4], 0
      %s773 = sshll.u32 [#allocation14], 4
      %s774 = int_to_ptr.vmem [resolvable:$true] %s773
      %s775 = sshll.u32 %s7, 4
      %s776 = int_to_ptr.hbm [resolvable:$true] %s775
      %778 = dma.vmem_to_hbm [thread:$0]  %s774, 512, %s776, [#allocation4]
    $region61: #{tpu_custom_call.1} parent=1 // pred_fallthru
      _
    // Predicated region
    $region62: #{tpu_custom_call.1} parent=1 // pred_check
      _
    $region63: #{tpu_custom_call.1} parent=1 // pred_check_branch
      %780 = sbr.rel (0) target = $region65
    $region64: #{tpu_custom_call.1} parent=1 // pred_region
      %782 = dma.done [#allocation4], 512
    $region65: #{tpu_custom_call.1} parent=1 // pred_fallthru
      _
    %783 = vsyncpa [#allocation3], 1
    %784 = vsyncpa [#allocation6], 1
    %785 = vsyncpa [#allocation9], 1
    %786 = vsyncpa [#allocation12], 1
    %787 = vsyncpa [#allocation4], 1

</llo_original>
